<compile_context>
chip_gen: v7x
topology: tpu7x:2x2x1
jax: 0.10.0
libtpu: 0.0.40
codegen_flags: <defaults>
</compile_context>

<pallas_src>
import numpy as np
import jax
import jax.numpy as jnp
from jax.experimental import pallas as pl
from jax.experimental.pallas import tpu as pltpu

# ---- config (mirrors cfg) ----------------------------------------------------
STATE_DIM  = 6          # cfg['general']['state_size'] (forward hard-codes 6 ns)
HIDDEN     = 32         # cfg['general']['hidden_size']
NUM_LAYERS = 2          # cfg['gan_paras']['layer_num']
NUM_HIDDEN = NUM_LAYERS - 1
NEG_SLOPE  = 0.2        # LeakyReLU slope used by NLayerLeakyMLP
PMAX       = 8          # rows available per component in the stacked w1 (parents + z)

FUSED_HID = STATE_DIM * HIDDEN        # 192
IN_COLS   = 2 * STATE_DIM             # 12  -> [y | z] after folding the gather
OUT_ROWS  = 8                         # STATE_DIM padded to a full sublane group

# weight-slab row offsets (all multiples of 8)
OFF_WH    = 0
OFF_WIN   = OFF_WH + NUM_HIDDEN * FUSED_HID
OFF_WO    = OFF_WIN + FUSED_HID
OFF_B     = OFF_WO + OUT_ROWS
SLAB_ROWS = OFF_B + FUSED_HID

TILE = 128                            # lane tile along the flattened call*batch axis


def _leaky(x):
    return jnp.where(x > 0, x, NEG_SLOPE * x)


# ---- Pallas kernel: transposed fused MLP, weights VMEM-resident ---------------
def generator_kernel(w_ref, yz_ref, o_ref):
    # first layer: parent-gather / z-concat already folded into the weights
    w_in = w_ref[OFF_WIN:OFF_WIN + FUSED_HID, 0:IN_COLS]               # (192, 12)
    b1   = w_ref[OFF_B:OFF_B + FUSED_HID, 0:1]                         # (192, 1)
    h = jnp.dot(w_in, yz_ref[...], preferred_element_type=jnp.float32) + b1
    h = _leaky(h)                                                      # (192, TILE)

    # hidden layers (static unroll; weights contiguous in the slab)
    for l in range(NUM_HIDDEN):
        wh = w_ref[OFF_WH + l * FUSED_HID:OFF_WH + (l + 1) * FUSED_HID, :]   # (192, 192)
        bh = w_ref[OFF_B:OFF_B + FUSED_HID, 1 + l:2 + l]                     # (192, 1)
        h = _leaky(jnp.dot(wh, h, preferred_element_type=jnp.float32) + bh)

    # output layer -> lane-dense (8, TILE) block (rows 6,7 are zero padding)
    wo = w_ref[OFF_WO:OFF_WO + OUT_ROWS, :]                             # (8, 192)
    bo = w_ref[OFF_B:OFF_B + OUT_ROWS, 1 + NUM_HIDDEN:2 + NUM_HIDDEN]   # (8, 1)
    o_ref[...] = jnp.dot(wo, h, preferred_element_type=jnp.float32) + bo


def generator_forward(y, z, weights):
    """y, z: (N, STATE_DIM) f32 where N may stack many generator invocations.
    Returns the embedding, (N, STATE_DIM) f32."""
    N = y.shape[0]
    n_pad = pl.cdiv(N, TILE) * TILE
    yz = jnp.concatenate([y, z], axis=1).T.astype(jnp.float32)          # (12, N)
    if n_pad != N:
        yz = jnp.pad(yz, ((0, 0), (0, n_pad - N)))

    out_t = pl.pallas_call(
        generator_kernel,
        out_shape=jax.ShapeDtypeStruct((OUT_ROWS, n_pad), jnp.float32),
        grid_spec=pltpu.PrefetchScalarGridSpec(
            num_scalar_prefetch=0,
            grid=(n_pad // TILE,),
            in_specs=[
                # coalesced weight slab: constant block index -> fetched once, VMEM-resident
                pl.BlockSpec((SLAB_ROWS, FUSED_HID), lambda n: (0, 0)),
                # streamed [y|z] tile, lane-dense along the row axis
                pl.BlockSpec((IN_COLS, TILE), lambda n: (0, n)),
            ],
            out_specs=pl.BlockSpec((OUT_ROWS, TILE), lambda n: (0, n)),
        ),
        compiler_params=pltpu.CompilerParams(
            dimension_semantics=("parallel",)),     # shards across v7x's 2 TCs
    )(weights, yz)

    return out_t[:STATE_DIM, :N].T                                       # (N, STATE_DIM)


# ---- one-time parameter packing (static reshuffle, outside the hot path) ------
def pack_params(params, index_list):
    w1, b1, wh, bh, wo, bo = [np.asarray(p, np.float32) for p in params]
    H = HIDDEN
    slab = np.zeros((SLAB_ROWS, FUSED_HID), np.float32)

    # hidden layers: block-diagonal, stored transposed (h_T = Wh.T @ h_T)
    for l in range(NUM_HIDDEN):
        blk = np.zeros((FUSED_HID, FUSED_HID), np.float32)
        for i in range(STATE_DIM):
            blk[i * H:(i + 1) * H, i * H:(i + 1) * H] = wh[i, l]
        slab[OFF_WH + l * FUSED_HID:OFF_WH + (l + 1) * FUSED_HID, :] = blk.T

    # first layer with the parent-gather / z-concat folded in:
    #   h = y @ Wy + z @ Wz + b1, stored transposed as W_in.T (192, 12)
    Wy = np.zeros((STATE_DIM, FUSED_HID), np.float32)
    Wz = np.zeros((STATE_DIM, FUSED_HID), np.float32)
    for i in range(STATE_DIM):
        idx = np.asarray(index_list[i]).reshape(-1)
        assert len(idx) + 1 <= w1.shape[1], (
            f"component {i}: {len(idx)} parents + z exceeds packed w1 rows ({w1.shape[1]})")
        for j, p in enumerate(idx):
            Wy[int(p), i * H:(i + 1) * H] += w1[i, j, :]
        Wz[i, i * H:(i + 1) * H] = w1[i, len(idx), :]
    W_in = np.concatenate([Wy, Wz], axis=0)                        # (12, 192)
    slab[OFF_WIN:OFF_WIN + FUSED_HID, :IN_COLS] = W_in.T

    # output layer, transposed, padded to 8 rows
    for i in range(STATE_DIM):
        slab[OFF_WO + i, i * H:(i + 1) * H] = wo[i, :, 0]

    # biases stored as columns (so they broadcast over the lane/row axis)
    slab[OFF_B:OFF_B + FUSED_HID, 0] = b1[:, 0, :].reshape(-1)
    for l in range(NUM_HIDDEN):
        slab[OFF_B:OFF_B + FUSED_HID, 1 + l] = bh[:, l, 0, :].reshape(-1)
    slab[OFF_B:OFF_B + STATE_DIM, 1 + NUM_HIDDEN] = bo[:, 0, 0]

    return jnp.asarray(slab)


# ---- pure-JAX reference (mirrors the PyTorch forward) --------------------------
def reference_forward(y, z, params, index_list):
    w1, b1, wh, bh, wo, bo = params
    outs = []
    for i in range(STATE_DIM):
        parents = y[:, index_list[i]]
        x_i = jnp.concatenate([parents, z[:, i:i + 1]], axis=-1)
        n_i = x_i.shape[-1]
        h = x_i @ w1[i, :n_i, :] + b1[i, 0]
        h = jnp.where(h > 0, h, NEG_SLOPE * h)
        for l in range(NUM_HIDDEN):
            h = h @ wh[i, l] + bh[i, l, 0]
            h = jnp.where(h > 0, h, NEG_SLOPE * h)
        outs.append(h @ wo[i] + bo[i, 0])
    return jnp.concatenate(outs, axis=-1)


if __name__ == "__main__":
    key = jax.random.PRNGKey(0)

    # GC_est: (STATE_DIM, STATE_DIM) binary causal mask; row i selects parents of i.
    GC_est = np.tril(np.ones((STATE_DIM, STATE_DIM), dtype=np.int32))
    index_list = [np.where(GC_est[i] == 1)[0] for i in range(STATE_DIM)]

    # deterministic synthetic parameters (stacked across the 6 per-component MLPs)
    k = jax.random.split(key, 8)
    w1 = 0.1 * jax.random.normal(k[0], (STATE_DIM, PMAX, HIDDEN), jnp.float32)
    b1 = 0.1 * jax.random.normal(k[1], (STATE_DIM, 1, HIDDEN), jnp.float32)
    wh = 0.1 * jax.random.normal(k[2], (STATE_DIM, NUM_HIDDEN, HIDDEN, HIDDEN), jnp.float32)
    bh = 0.1 * jax.random.normal(k[3], (STATE_DIM, NUM_HIDDEN, 1, HIDDEN), jnp.float32)
    wo = 0.1 * jax.random.normal(k[4], (STATE_DIM, HIDDEN, 1), jnp.float32)
    bo = 0.1 * jax.random.normal(k[5], (STATE_DIM, 1, 1), jnp.float32)
    params = (w1, b1, wh, bh, wo, bo)

    # 50 generator invocations of batch 8, collapsed into one kernel launch
    NUM_CALLS, BATCH = 50, 8
    N = NUM_CALLS * BATCH                         # 400 rows -> padded to 512, grid=(4,)
    y = jax.random.normal(k[6], (N, STATE_DIM), jnp.float32)
    z = jax.random.normal(k[7], (N, STATE_DIM), jnp.float32)

    weights = jax.block_until_ready(pack_params(params, index_list))   # one-time packing

    fwd = jax.jit(generator_forward)
    emb = jax.block_until_ready(fwd(y, z, weights))

    ref = jax.block_until_ready(reference_forward(y, z, params, index_list))
    assert emb.shape == (N, STATE_DIM), emb.shape
    np.testing.assert_allclose(np.asarray(emb), np.asarray(ref), rtol=1e-4, atol=1e-5)

    print("KERNEL_OK")
</pallas_src>

<mosaic_0001>
module attributes {stable_mosaic.version = 11 : i64} {
  func.func @generator_kernel(%arg0: i32, %arg1: memref<584x192xf32, #tpu.memory_space<vmem>>, %arg2: memref<12x128xf32, #tpu.memory_space<vmem>>, %arg3: memref<8x128xf32, #tpu.memory_space<vmem>>) attributes {dimension_semantics = [#tpu.dimension_semantics<parallel>], iteration_bounds = array<i64: 4>, scalar_prefetch = 0 : i64, scratch_operands = 0 : i64, tpu.core_type = #tpu.core_type<tc>, window_params = [{pipeline_mode = #tpu.pipeline_mode<synchronous>, transform_indices = @transform_0, window_bounds = array<i64: 584, 192>}, {transform_indices = @transform_1, window_bounds = array<i64: 12, 128>}, {transform_indices = @transform_2, window_bounds = array<i64: 8, 128>}]} {
    %c192 = arith.constant 192 : index
    %c0 = arith.constant 0 : index
    %0 = vector.load %arg1[%c192, %c0] : memref<584x192xf32, #tpu.memory_space<vmem>>, vector<192x12xf32>
    %c392 = arith.constant 392 : index
    %c0_0 = arith.constant 0 : index
    %1 = vector.load %arg1[%c392, %c0_0] : memref<584x192xf32, #tpu.memory_space<vmem>>, vector<192x1xf32>
    %c0_1 = arith.constant 0 : index
    %c0_2 = arith.constant 0 : index
    %2 = vector.load %arg2[%c0_1, %c0_2] : memref<12x128xf32, #tpu.memory_space<vmem>>, vector<12x128xf32>
    %cst = arith.constant dense<0.000000e+00> : vector<192x128xf32>
    %3 = tpu.matmul %0, %2, %cst {dimension_numbers = #tpu.dot_dimension_numbers<[1], [0], [0], [1], [0, 0, 1, 1], [], []>} : vector<192x12xf32>, vector<12x128xf32>, vector<192x128xf32> -> vector<192x128xf32>
    %4 = vector.broadcast %1 : vector<192x1xf32> to vector<192x128xf32>
    %5 = arith.addf %3, %4 : vector<192x128xf32>
    %cst_3 = arith.constant 0.000000e+00 : f32
    %6 = vector.broadcast %cst_3 : f32 to vector<192x128xf32>
    %7 = arith.cmpf ogt, %5, %6 : vector<192x128xf32>
    %cst_4 = arith.constant 2.000000e-01 : f32
    %8 = vector.broadcast %cst_4 : f32 to vector<192x128xf32>
    %9 = arith.mulf %8, %5 : vector<192x128xf32>
    %10 = arith.select %7, %5, %9 : vector<192x128xi1>, vector<192x128xf32>
    %c0_5 = arith.constant 0 : index
    %c0_6 = arith.constant 0 : index
    %11 = vector.load %arg1[%c0_5, %c0_6] : memref<584x192xf32, #tpu.memory_space<vmem>>, vector<192x192xf32>
    %c392_7 = arith.constant 392 : index
    %c1 = arith.constant 1 : index
    %12 = vector.load %arg1[%c392_7, %c1] : memref<584x192xf32, #tpu.memory_space<vmem>>, vector<192x1xf32>
    %cst_8 = arith.constant dense<0.000000e+00> : vector<192x128xf32>
    %13 = tpu.matmul %11, %10, %cst_8 {dimension_numbers = #tpu.dot_dimension_numbers<[1], [0], [0], [1], [0, 0, 1, 1], [], []>} : vector<192x192xf32>, vector<192x128xf32>, vector<192x128xf32> -> vector<192x128xf32>
    %14 = vector.broadcast %12 : vector<192x1xf32> to vector<192x128xf32>
    %15 = arith.addf %13, %14 : vector<192x128xf32>
    %cst_9 = arith.constant 0.000000e+00 : f32
    %16 = vector.broadcast %cst_9 : f32 to vector<192x128xf32>
    %17 = arith.cmpf ogt, %15, %16 : vector<192x128xf32>
    %cst_10 = arith.constant 2.000000e-01 : f32
    %18 = vector.broadcast %cst_10 : f32 to vector<192x128xf32>
    %19 = arith.mulf %18, %15 : vector<192x128xf32>
    %20 = arith.select %17, %15, %19 : vector<192x128xi1>, vector<192x128xf32>
    %c384 = arith.constant 384 : index
    %c0_11 = arith.constant 0 : index
    %21 = vector.load %arg1[%c384, %c0_11] : memref<584x192xf32, #tpu.memory_space<vmem>>, vector<8x192xf32>
    %c392_12 = arith.constant 392 : index
    %c2 = arith.constant 2 : index
    %22 = vector.load %arg1[%c392_12, %c2] : memref<584x192xf32, #tpu.memory_space<vmem>>, vector<8x1xf32>
    %cst_13 = arith.constant dense<0.000000e+00> : vector<8x128xf32>
    %23 = tpu.matmul %21, %20, %cst_13 {dimension_numbers = #tpu.dot_dimension_numbers<[1], [0], [0], [1], [0, 0, 1, 1], [], []>} : vector<8x192xf32>, vector<192x128xf32>, vector<8x128xf32> -> vector<8x128xf32>
    %24 = vector.broadcast %22 : vector<8x1xf32> to vector<8x128xf32>
    %25 = arith.addf %23, %24 : vector<8x128xf32>
    %c0_14 = arith.constant 0 : index
    %c0_15 = arith.constant 0 : index
    %26 = vector.load %arg3[%c0_14, %c0_15] : memref<8x128xf32, #tpu.memory_space<vmem>>, vector<8x128xf32>
    tpu.vector_store %arg3[%c0_14, %c0_15], %25 {strides = array<i32>} : memref<8x128xf32, #tpu.memory_space<vmem>>, vector<8x128xf32>,
    return
  }
  func.func @transform_0(%arg0: i32) -> (i32, i32) {
    %c0_i32 = arith.constant 0 : i32
    %c0_i32_0 = arith.constant 0 : i32
    %c0_i32_1 = arith.constant 0 : i32
    return %c0_i32, %c0_i32_0 : i32, i32
  }
  func.func @transform_1(%arg0: i32) -> (i32, i32) {
    %c0_i32 = arith.constant 0 : i32
    %c0_i32_0 = arith.constant 0 : i32
    return %c0_i32, %arg0 : i32, i32
  }
  func.func @transform_2(%arg0: i32) -> (i32, i32) {
    %c0_i32 = arith.constant 0 : i32
    %c0_i32_0 = arith.constant 0 : i32
    return %c0_i32, %arg0 : i32, i32
  }
}

</mosaic_0001>

<llo_original>
// kernel: generator_forward.1
$region0: #{generator_forward.1}
  #allocation0 [shape = 'u32[]', space=smem, size = 0x4, offset = 0x4, fixed_abs, tag = 'smem constant byte address 0x4 - core index']
  #allocation1 [shape = 'u32[144,128]{1,0:T(1,128)}', space=vmem, size = 0x12000, scoped, tag = 'internal scratch']
  %s0 = inlined_call_operand.vmem [shape: f32[584,192], index: 0, kind: input, shape index: {}]
  %s1 = inlined_call_operand.vmem [shape: f32[12,512], index: 1, kind: input, shape index: {}]
  %s2 = inlined_call_operand.vmem [shape: f32[8,512], index: 2, kind: output, shape index: {}]
  %s3 = sld [smem:[#allocation0]]
  $region79: #{generator_forward.1} parent=0
    _
  %s5 = ssub.s32 1, %s3
  %s6 = scalar_select 0, %s5, %s3
  $region1: #{generator_forward.1} parent=0
    #allocation2 [shape = 'u8[16384]{0}', space=vmem, size = 0x4000, scoped, tag = 'input window, operand 1']
    loop: start=0, step=1, limit=6
    $region2: #{generator_forward.1} parent=1 // loop_pre_header
      _
    $region3: #{generator_forward.1} parent=1 // loop_header
      %s8 = sphi 0, %s12
      %p9 = scmp.ge.s32.totalorder %s8, 6
      %s16 = sphi 0, %s16
      %s18 = sphi 0, %s16
      %s19 = sphi 0, %s18
      %s33 = sphi 0, %s19
      %s39 = sphi 0, %s41
      %s42 = sphi 0, %s39
      %s43 = sphi 0, %s42
      %s59 = sphi 0, %s43
      %s65 = sphi 0, %s67
      %s68 = sphi 0, %s65
      %s69 = sphi 0, %s68
      %s85 = sphi 0, %s69
    $region4: #{generator_forward.1} parent=1 // loop_header_branch
      %11 = sbr.rel (%p9) target = $region8
    $region5: #{generator_forward.1} parent=1 // loop_body
      %s13 = ssub.s32 %s8, 1
      %s14 = ssub.s32 %s8, 2
      %s15 = sadd.s32 %s8, 1
      %s17 = sadd.s32 %s16, 1
      %p20 = scmp.eq.s32.totalorder %s8, 3
      %p21 = scmp.ne.s32.totalorder %s16, %s18
      %p22 = scmp.eq.s32.totalorder %s8, 0
      %p23 = por %p21, %p22
      %p24 = scmp.ne.s32.totalorder %s16, %s18
      %p25 = scmp.eq.s32.totalorder %s13, 3
      %p26 = por %p24, %p25
      %p27 = scmp.ne.s32.totalorder %s18, %s19
      %p28 = scmp.eq.s32.totalorder %s13, 0
      %p29 = por %p27, %p28
      %p30 = scmp.ne.s32.totalorder %s18, %s19
      %p31 = scmp.eq.s32.totalorder %s14, 3
      %p32 = por %p30, %p31
      %p34 = scmp.ne.s32.totalorder %s19, %s33
      %p35 = scmp.eq.s32.totalorder %s14, 0
      %p36 = por %p34, %p35
      %s37 = ssub.s32 %s8, %s15
      %p38 = scmp.eq.s32.totalorder %s37, 0
      %s40 = sadd.s32 %s39, 1
      %s41 = scalar_select %p38, %s39, %s40
      %p44 = pneg %p38
      %p45 = scmp.eq.s32.totalorder %s8, 3
      %p46 = por %p44, %p45
      %p47 = scmp.ne.s32.totalorder %s39, %s42
      %p48 = scmp.eq.s32.totalorder %s8, 0
      %p49 = por %p47, %p48
      %p50 = scmp.ne.s32.totalorder %s39, %s42
      %p51 = scmp.eq.s32.totalorder %s13, 3
      %p52 = por %p50, %p51
      %p53 = scmp.ne.s32.totalorder %s42, %s43
      %p54 = scmp.eq.s32.totalorder %s13, 0
      %p55 = por %p53, %p54
      %p56 = scmp.ne.s32.totalorder %s42, %s43
      %p57 = scmp.eq.s32.totalorder %s14, 3
      %p58 = por %p56, %p57
      %p60 = scmp.ne.s32.totalorder %s43, %s59
      %p61 = scmp.eq.s32.totalorder %s14, 0
      %p62 = por %p60, %p61
      %s63 = ssub.s32 %s8, %s15
      %p64 = scmp.eq.s32.totalorder %s63, 0
      %s66 = sadd.s32 %s65, 1
      %s67 = scalar_select %p64, %s65, %s66
      %p70 = pneg %p64
      %p71 = scmp.eq.s32.totalorder %s8, 3
      %p72 = por %p70, %p71
      %p73 = scmp.ne.s32.totalorder %s65, %s68
      %p74 = scmp.eq.s32.totalorder %s8, 0
      %p75 = por %p73, %p74
      %p76 = scmp.ne.s32.totalorder %s65, %s68
      %p77 = scmp.eq.s32.totalorder %s13, 3
      %p78 = por %p76, %p77
      %p79 = scmp.ne.s32.totalorder %s68, %s69
      %p80 = scmp.eq.s32.totalorder %s13, 0
      %p81 = por %p79, %p80
      %p82 = scmp.ne.s32.totalorder %s68, %s69
      %p83 = scmp.eq.s32.totalorder %s14, 3
      %p84 = por %p82, %p83
      %p86 = scmp.ne.s32.totalorder %s69, %s85
      %p87 = scmp.eq.s32.totalorder %s14, 0
      %p88 = por %p86, %p87
      %p89 = scmp.le.s32.totalorder 1, %s8
      %p90 = scmp.lt.s32.totalorder %s8, 5
      %p91 = pnand %p89, %p90
      %p92 = pneg %p91
      // Predicated region
      $region9: #{generator_forward.1} parent=5 // pred_check
        _
      $region10: #{generator_forward.1} parent=5 // pred_check_branch
        %94 = sbr.rel (%p91) target = $region12
      $region11: #{generator_forward.1} parent=5 // pred_region
        %s95 = ssub.s32 %s8, 1
        // Predicated region
        $region13: #{generator_forward.1} parent=11 // pred_check
          %p96 = pneg %p29
        $region14: #{generator_forward.1} parent=11 // pred_check_branch
          %98 = sbr.rel (%p96) target = $region16
        $region15: #{generator_forward.1} parent=11 // pred_region
          _
        $region16: #{generator_forward.1} parent=11 // pred_fallthru
          _
      $region12: #{generator_forward.1} parent=5 // pred_fallthru
        _
      %p99 = scmp.lt.s32.totalorder %s8, 4
      // Predicated region
      $region17: #{generator_forward.1} parent=5 // pred_check
        %p100 = pneg %p99
      $region18: #{generator_forward.1} parent=5 // pred_check_branch
        %102 = sbr.rel (%p100) target = $region20
      $region19: #{generator_forward.1} parent=5 // pred_region
        // Predicated region
        $region21: #{generator_forward.1} parent=19 // pred_check
          %p103 = pneg %p49
        $region22: #{generator_forward.1} parent=19 // pred_check_branch
          %105 = sbr.rel (%p103) target = $region24
        $region23: #{generator_forward.1} parent=19 // pred_region
          %s106 = sand.u32 %s39, 1
          %s107 = sand.u32 %s39, 1
          %s108 = smul.addr %s107, 16
          %s109 = scalar_lea.vmem [#allocation2], %s108
          %s110 = smul.addr %s8, 8
          %s111 = scalar_lea.vmem %s1, %s110
          // Predicated region
          $region25: #{generator_forward.1} parent=23 // pred_check
            _
          $region26: #{generator_forward.1} parent=23 // pred_check_branch
            %113 = sbr.rel (0) target = $region28
          $region27: #{generator_forward.1} parent=23 // pred_region
            // Predicated region
            $region29: #{generator_forward.1} parent=27 // pred_check
              _
            $region30: #{generator_forward.1} parent=27 // pred_check_branch
              %115 = sbr.rel (0) target = $region32
            $region31: #{generator_forward.1} parent=27 // pred_region
              // Predicated region
              $region44: #{generator_forward.1} parent=31 // pred_check
                _
              $region45: #{generator_forward.1} parent=31 // pred_check_branch
                %132 = sbr.rel (0) target = $region47
              $region46: #{generator_forward.1} parent=31 // pred_region
                loop: start=0, step=1, limit=1
                $region48: #{generator_forward.1} parent=46 // loop_pre_header
                  _
                $region49: #{generator_forward.1} parent=46 // loop_header
                  %s134 = sphi 0, %s138
                  %p135 = scmp.ge.s32.totalorder %s134, 1
                  %s139 = sphi %s111, %s111
                  %s140 = sphi %s109, %s109
                $region50: #{generator_forward.1} parent=46 // loop_header_branch
                  %137 = sbr.rel (%p135) target = $region54
                $region51: #{generator_forward.1} parent=46 // loop_body
                  %v141 = vld [vmem:[%s139] sm:$0xff]
                  %142 = vst [vmem:[%s140] sm:$0xff] %v141
                  %v143 = vld [vmem:[%s139 + $0x20] sm:$0xff]
                  %144 = vst [vmem:[%s140 + $0x8] sm:$0xff] %v143
                $region52: #{generator_forward.1} parent=46 // loop_footer
                  %s138 = sadd.s32 1, %s134
                $region53: #{generator_forward.1} parent=46 // loop_footer_branch
                  %133 = sbr.rel target = $region49
                $region54: #{generator_forward.1} parent=46 // loop_exit
                  _
              $region47: #{generator_forward.1} parent=31 // pred_fallthru
                _
              // Predicated region
              $region55: #{generator_forward.1} parent=31 // pred_check
                _
              $region56: #{generator_forward.1} parent=31 // pred_check_branch
                %146 = sbr.rel target = $region58
              $region57: #{generator_forward.1} parent=31 // pred_region
                _
              $region58: #{generator_forward.1} parent=31 // pred_fallthru
                _
            $region32: #{generator_forward.1} parent=27 // pred_fallthru
              _
            // Predicated region
            $region33: #{generator_forward.1} parent=27 // pred_check
              _
            $region34: #{generator_forward.1} parent=27 // pred_check_branch
              %117 = sbr.rel target = $region36
            $region35: #{generator_forward.1} parent=27 // pred_region
              loop: start=0, step=1, limit=1
              $region37: #{generator_forward.1} parent=35 // loop_pre_header
                _
              $region38: #{generator_forward.1} parent=35 // loop_header
                %s120 = sphi 0, %s124
                %p121 = scmp.ge.s32.totalorder %s120, 1
                %s125 = sphi %s111, %s111
                %s126 = sphi %s109, %s109
              $region39: #{generator_forward.1} parent=35 // loop_header_branch
                %123 = sbr.rel (%p121) target = $region43
              $region40: #{generator_forward.1} parent=35 // loop_body
                %v127 = vld [vmem:[%s125] sm:$0xff]
                %128 = vst [vmem:[%s126] sm:$0xff] %v127
                %v129 = vld [vmem:[%s125 + $0x20] sm:$0xff]
                %130 = vst [vmem:[%s126 + $0x8] sm:$0xff] %v129
              $region41: #{generator_forward.1} parent=35 // loop_footer
                %s124 = sadd.s32 1, %s120
              $region42: #{generator_forward.1} parent=35 // loop_footer_branch
                %119 = sbr.rel target = $region38
              $region43: #{generator_forward.1} parent=35 // loop_exit
                _
            $region36: #{generator_forward.1} parent=27 // pred_fallthru
              _
          $region28: #{generator_forward.1} parent=23 // pred_fallthru
            _
          %147 = vnop
        $region24: #{generator_forward.1} parent=19 // pred_fallthru
          _
      $region20: #{generator_forward.1} parent=5 // pred_fallthru
        _
      %p148 = scmp.le.s32.totalorder 1, %s8
      %p149 = scmp.lt.s32.totalorder %s8, 5
      %p150 = pnand %p148, %p149
      %p151 = pneg %p150
      // Predicated region
      $region59: #{generator_forward.1} parent=5 // pred_check
        _
      $region60: #{generator_forward.1} parent=5 // pred_check_branch
        %153 = sbr.rel (%p150) target = $region62
      $region61: #{generator_forward.1} parent=5 // pred_region
        %s154 = ssub.s32 %s8, 1
        %s155 = sand.u32 %s42, 1
        %s156 = sand.u32 %s42, 1
        %s157 = smul.addr %s156, 16
        %s158 = scalar_lea.vmem [#allocation2], %s157
        // Predicated region
        $region63: #{generator_forward.1} parent=61 // pred_check
          %p159 = pneg %p55
        $region64: #{generator_forward.1} parent=61 // pred_check_branch
          %161 = sbr.rel (%p159) target = $region66
        $region65: #{generator_forward.1} parent=61 // pred_region
          _
        $region66: #{generator_forward.1} parent=61 // pred_fallthru
          _
        %p162 = pneg %p29
        %p163 = pneg %p26
        %s164 = sand.u32 %s42, 1
        %s165 = sand.u32 %s42, 1
        %s166 = smul.addr %s165, 16
        %s167 = scalar_lea.vmem [#allocation2], %s166
        %p168 = pneg %p55
        %p169 = pneg %p52
        %p170 = pneg %p81
        %p171 = pneg %p78
        %p172 = scmp.lt.s32.totalorder %s13, 3
        %s173 = scalar_select %p172, %s13, 3
        %s174 = smul.addr %s173, 8
        %s175 = scalar_lea.vmem %s2, %s174
        %p176 = scmp.lt.s32.totalorder %s13, 3
        %s177 = scalar_select %p176, %s13, 3
        %s178 = smul.addr %s177, 8
        %s179 = scalar_lea.vmem %s2, %s178
        %v180 = vld [vmem:[%s0 + $0x180] sm:$0xff]
        %v181 = vld [vmem:[%s0 + $0x190] sm:$0xff]
        %v182 = vld [vmem:[%s0 + $0x1a0] sm:$0xff]
        %v183 = vld [vmem:[%s0 + $0x1b0] sm:$0xff]
        %v184 = vld [vmem:[%s0 + $0x1c0] sm:$0xff]
        %v185 = vld [vmem:[%s0 + $0x1d0] sm:$0xff]
        %v186 = vld [vmem:[%s0 + $0x1e0] sm:$0xff]
        %v187 = vld [vmem:[%s0 + $0x1f0] sm:$0xff]
        %v188 = vld [vmem:[%s0 + $0x200] sm:$0xff]
        %v189 = vld [vmem:[%s0 + $0x210] sm:$0xff]
        %v190 = vld [vmem:[%s0 + $0x220] sm:$0xff]
        %v191 = vld [vmem:[%s0 + $0x230] sm:$0xff]
        %v192 = vld [vmem:[%s0 + $0x240] sm:$0xff]
        %v193 = vld [vmem:[%s0 + $0x250] sm:$0xff]
        %v194 = vld [vmem:[%s0 + $0x260] sm:$0xff]
        %v195 = vld [vmem:[%s0 + $0x270] sm:$0xff]
        %v196 = vld [vmem:[%s0 + $0x280] sm:$0xff]
        %v197 = vld [vmem:[%s0 + $0x290] sm:$0xff]
        %v198 = vld [vmem:[%s0 + $0x2a0] sm:$0xff]
        %v199 = vld [vmem:[%s0 + $0x2b0] sm:$0xff]
        %v200 = vld [vmem:[%s0 + $0x2c0] sm:$0xff]
        %v201 = vld [vmem:[%s0 + $0x2d0] sm:$0xff]
        %v202 = vld [vmem:[%s0 + $0x2e0] sm:$0xff]
        %v203 = vld [vmem:[%s0 + $0x2f0] sm:$0xff]
        %v204 = vld [vmem:[%s0 + $0x310] sm:$0xff]
        %v205 = vld [vmem:[%s0 + $0x320] sm:$0xff]
        %v206 = vld [vmem:[%s0 + $0x330] sm:$0xff]
        %v207 = vld [vmem:[%s0 + $0x340] sm:$0xff]
        %v208 = vld [vmem:[%s0 + $0x350] sm:$0xff]
        %v209 = vld [vmem:[%s0 + $0x360] sm:$0xff]
        %v210 = vld [vmem:[%s0 + $0x370] sm:$0xff]
        %v211 = vld [vmem:[%s0 + $0x380] sm:$0xff]
        %v212 = vld [vmem:[%s0 + $0x390] sm:$0xff]
        %v213 = vld [vmem:[%s0 + $0x3a0] sm:$0xff]
        %v214 = vld [vmem:[%s0 + $0x3b0] sm:$0xff]
        %v215 = vld [vmem:[%s0 + $0x3c0] sm:$0xff]
        %v216 = vld [vmem:[%s0 + $0x3d0] sm:$0xff]
        %v217 = vld [vmem:[%s0 + $0x3e0] sm:$0xff]
        %v218 = vld [vmem:[%s0 + $0x3f0] sm:$0xff]
        %v219 = vld [vmem:[%s0 + $0x400] sm:$0xff]
        %v220 = vld [vmem:[%s0 + $0x410] sm:$0xff]
        %v221 = vld [vmem:[%s0 + $0x420] sm:$0xff]
        %v222 = vld [vmem:[%s0 + $0x430] sm:$0xff]
        %v223 = vld [vmem:[%s0 + $0x440] sm:$0xff]
        %v224 = vld [vmem:[%s0 + $0x450] sm:$0xff]
        %v225 = vld [vmem:[%s0 + $0x460] sm:$0xff]
        %v226 = vld [vmem:[%s0 + $0x470] sm:$0xff]
        %v227 = vld [vmem:[%s0 + $0x480] sm:$0xff]
        %v228 = vld [vmem:[%s158] sm:$0xff]
        %v229 = vld [vmem:[%s158 + $0x8] sm:$0xf]
        %231 = vset.pattern.permute.xlu0 0
        %232 = vperm.xlu0 %231, %v204
        %v233 = vpop.permute.xlu0 %232
        %236 = vset.pattern.permute.xlu0 0
        %237 = vperm.xlu0 %236, %v205
        %v238 = vpop.permute.xlu0 %237
        %241 = vset.pattern.permute.xlu0 0
        %242 = vperm.xlu0 %241, %v206
        %v243 = vpop.permute.xlu0 %242
        %246 = vset.pattern.permute.xlu0 0
        %247 = vperm.xlu0 %246, %v207
        %v248 = vpop.permute.xlu0 %247
        %251 = vset.pattern.permute.xlu0 0
        %252 = vperm.xlu0 %251, %v208
        %v253 = vpop.permute.xlu0 %252
        %256 = vset.pattern.permute.xlu0 0
        %257 = vperm.xlu0 %256, %v209
        %v258 = vpop.permute.xlu0 %257
        %261 = vset.pattern.permute.xlu0 0
        %262 = vperm.xlu0 %261, %v210
        %v263 = vpop.permute.xlu0 %262
        %266 = vset.pattern.permute.xlu0 0
        %267 = vperm.xlu0 %266, %v211
        %v268 = vpop.permute.xlu0 %267
        %271 = vset.pattern.permute.xlu0 0
        %272 = vperm.xlu0 %271, %v212
        %v273 = vpop.permute.xlu0 %272
        %276 = vset.pattern.permute.xlu0 0
        %277 = vperm.xlu0 %276, %v213
        %v278 = vpop.permute.xlu0 %277
        %281 = vset.pattern.permute.xlu0 0
        %282 = vperm.xlu0 %281, %v214
        %v283 = vpop.permute.xlu0 %282
        %286 = vset.pattern.permute.xlu0 0
        %287 = vperm.xlu0 %286, %v215
        %v288 = vpop.permute.xlu0 %287
        %291 = vset.pattern.permute.xlu0 0
        %292 = vperm.xlu0 %291, %v216
        %v293 = vpop.permute.xlu0 %292
        %296 = vset.pattern.permute.xlu0 0
        %297 = vperm.xlu0 %296, %v217
        %v298 = vpop.permute.xlu0 %297
        %301 = vset.pattern.permute.xlu0 0
        %302 = vperm.xlu0 %301, %v218
        %v303 = vpop.permute.xlu0 %302
        %306 = vset.pattern.permute.xlu0 0
        %307 = vperm.xlu0 %306, %v219
        %v308 = vpop.permute.xlu0 %307
        %311 = vset.pattern.permute.xlu0 0
        %312 = vperm.xlu0 %311, %v220
        %v313 = vpop.permute.xlu0 %312
        %316 = vset.pattern.permute.xlu0 0
        %317 = vperm.xlu0 %316, %v221
        %v318 = vpop.permute.xlu0 %317
        %321 = vset.pattern.permute.xlu0 0
        %322 = vperm.xlu0 %321, %v222
        %v323 = vpop.permute.xlu0 %322
        %326 = vset.pattern.permute.xlu0 0
        %327 = vperm.xlu0 %326, %v223
        %v328 = vpop.permute.xlu0 %327
        %331 = vset.pattern.permute.xlu0 0
        %332 = vperm.xlu0 %331, %v224
        %v333 = vpop.permute.xlu0 %332
        %336 = vset.pattern.permute.xlu0 0
        %337 = vperm.xlu0 %336, %v225
        %v338 = vpop.permute.xlu0 %337
        %341 = vset.pattern.permute.xlu0 0
        %342 = vperm.xlu0 %341, %v226
        %v343 = vpop.permute.xlu0 %342
        %346 = vset.pattern.permute.xlu0 0
        %347 = vperm.xlu0 %346, %v227
        %v348 = vpop.permute.xlu0 %347
        %vm350 = vcmask 97280
        %v352 = vsel %vm350, %v180, 0
        %v355 = vsel %vm350, %v181, 0
        %v358 = vsel %vm350, %v182, 0
        %v361 = vsel %vm350, %v183, 0
        %v364 = vsel %vm350, %v184, 0
        %v367 = vsel %vm350, %v185, 0
        %v370 = vsel %vm350, %v186, 0
        %v373 = vsel %vm350, %v187, 0
        %v376 = vsel %vm350, %v188, 0
        %v379 = vsel %vm350, %v189, 0
        %v382 = vsel %vm350, %v190, 0
        %v385 = vsel %vm350, %v191, 0
        %v388 = vsel %vm350, %v192, 0
        %v391 = vsel %vm350, %v193, 0
        %v394 = vsel %vm350, %v194, 0
        %v397 = vsel %vm350, %v195, 0
        %v400 = vsel %vm350, %v196, 0
        %v403 = vsel %vm350, %v197, 0
        %v406 = vsel %vm350, %v198, 0
        %v409 = vsel %vm350, %v199, 0
        %v412 = vsel %vm350, %v200, 0
        %v415 = vsel %vm350, %v201, 0
        %v418 = vsel %vm350, %v202, 0
        %v421 = vsel %vm350, %v203, 0
        %vm423 = vcmask 1043456
        %v425 = vsel %vm423, %v229, 0
        %427 = vmatprep.subr.mxu0 0.0
        %428 = vmatpush1.msra.mxu0 %v228
        %429 = vmatprep.subr.mxu0 0.0
        %430 = vmatpush1.msra.mxu0 %v425
        %431 = vmatprep.subr.mxu0 0.0
        %432 = vmatpush1.msra.mxu0 0.0
        %433 = vmatprep.subr.mxu0 0.0
        %434 = vmatpush1.msra.mxu0 0.0
        %435 = vmatprep.subr.mxu0 0.0
        %436 = vmatpush1.msra.mxu0 0.0
        %437 = vmatprep.subr.mxu0 0.0
        %438 = vmatpush1.msra.mxu0 0.0
        %439 = vmatprep.subr.mxu0 0.0
        %440 = vmatpush1.msra.mxu0 0.0
        %441 = vmatprep.subr.mxu0 0.0
        %442 = vmatpush1.msra.mxu0 0.0
        %443 = vmatprep.subr.mxu0 0.0
        %444 = vmatpush1.msra.mxu0 0.0
        %445 = vmatprep.subr.mxu0 0.0
        %446 = vmatpush1.msra.mxu0 0.0
        %447 = vmatprep.subr.mxu0 0.0
        %448 = vmatpush1.msra.mxu0 0.0
        %449 = vmatprep.subr.mxu0 0.0
        %450 = vmatpush1.msra.mxu0 0.0
        %451 = vmatprep.subr.mxu0 0.0
        %452 = vmatpush1.msra.mxu0 0.0
        %453 = vmatprep.subr.mxu0 0.0
        %454 = vmatpush1.msra.mxu0 0.0
        %455 = vmatprep.subr.mxu0 0.0
        %456 = vmatpush1.msra.mxu0 0.0
        %457 = vmatprep.subr.mxu0 0.0
        %458 = vmatpush1.msra.mxu0 0.0
        %459 = vmatprep.subr.mxu0 0.0
        %460 = vmatpush1.msra.mxu0 0.0
        %461 = vmatprep.subr.mxu0 0.0
        %462 = vmatpush1.msra.mxu0 0.0
        %463 = vmatprep.subr.mxu0 0.0
        %464 = vmatpush1.msra.mxu0 0.0
        %465 = vmatprep.subr.mxu0 0.0
        %466 = vmatpush1.msra.mxu0 0.0
        %467 = vmatprep.subr.mxu0 0.0
        %468 = vmatpush1.msra.mxu0 0.0
        %469 = vmatprep.subr.mxu0 0.0
        %470 = vmatpush1.msra.mxu0 0.0
        %471 = vmatprep.subr.mxu0 0.0
        %472 = vmatpush1.msra.mxu0 0.0
        %473 = vmatprep.subr.mxu0 0.0
        %474 = vmatpush1.msra.mxu0 0.0
        %475 = vmatprep.subr.mxu0 0.0
        %476 = vmatpush1.msra.mxu0 0.0
        %477 = vmatprep.subr.mxu0 0.0
        %478 = vmatpush1.msra.mxu0 0.0
        %479 = vmatprep.subr.mxu0 0.0
        %480 = vmatpush1.msra.mxu0 0.0
        %481 = vmatprep.subr.mxu0 0.0
        %482 = vmatpush1.msra.mxu0 0.0
        %483 = vmatprep.subr.mxu0 0.0
        %484 = vmatpush1.msra.mxu0 0.0
        %485 = vmatprep.subr.mxu0 0.0
        %486 = vmatpush1.msra.mxu0 0.0
        %487 = vmatprep.subr.mxu0 0.0
        %488 = vmatpush1.msra.mxu0 0.0
        %489 = vmatprep.subr.mxu0 0.0
        %490 = vmatpush1.msra.mxu0 0.0
        %491 = vmatprep.mubr.f32.mxu0 0.0
        %492 = vmatmul.mubr.f32.gmra.mrb[0].mxu0 %v352
        %v493 = vpop.f32.mrb[0].mxu0
        %v494 = vadd.f32 %v233, %v493
        %v495 = vpop.f32.mrb[0].mxu0
        %496 = vmatprep.mubr.f32.mxu0 0.0
        %497 = vmatmul.mubr.f32.gmra.mrb[0].mxu0 %v355
        %v498 = vpop.f32.mrb[0].mxu0
        %v499 = vadd.f32 %v238, %v498
        %v500 = vpop.f32.mrb[0].mxu0
        %501 = vmatprep.mubr.f32.mxu0 0.0
        %502 = vmatmul.mubr.f32.gmra.mrb[0].mxu0 %v358
        %v503 = vpop.f32.mrb[0].mxu0
        %v504 = vadd.f32 %v243, %v503
        %v505 = vpop.f32.mrb[0].mxu0
        %506 = vmatprep.mubr.f32.mxu0 0.0
        %507 = vmatmul.mubr.f32.gmra.mrb[0].mxu0 %v361
        %v508 = vpop.f32.mrb[0].mxu0
        %v509 = vadd.f32 %v248, %v508
        %v510 = vpop.f32.mrb[0].mxu0
        %511 = vmatprep.mubr.f32.mxu0 0.0
        %512 = vmatmul.mubr.f32.gmra.mrb[0].mxu0 %v364
        %v513 = vpop.f32.mrb[0].mxu0
        %v514 = vadd.f32 %v253, %v513
        %v515 = vpop.f32.mrb[0].mxu0
        %516 = vmatprep.mubr.f32.mxu0 0.0
        %517 = vmatmul.mubr.f32.gmra.mrb[0].mxu0 %v367
        %v518 = vpop.f32.mrb[0].mxu0
        %v519 = vadd.f32 %v258, %v518
        %v520 = vpop.f32.mrb[0].mxu0
        %521 = vmatprep.mubr.f32.mxu0 0.0
        %522 = vmatmul.mubr.f32.gmra.mrb[0].mxu0 %v370
        %v523 = vpop.f32.mrb[0].mxu0
        %v524 = vadd.f32 %v263, %v523
        %v525 = vpop.f32.mrb[0].mxu0
        %526 = vmatprep.mubr.f32.mxu0 0.0
        %527 = vmatmul.mubr.f32.gmra.mrb[0].mxu0 %v373
        %v528 = vpop.f32.mrb[0].mxu0
        %v529 = vadd.f32 %v268, %v528
        %v530 = vpop.f32.mrb[0].mxu0
        %531 = vmatprep.mubr.f32.mxu0 0.0
        %532 = vmatmul.mubr.f32.gmra.mrb[0].mxu0 %v376
        %v533 = vpop.f32.mrb[0].mxu0
        %v534 = vadd.f32 %v273, %v533
        %v535 = vpop.f32.mrb[0].mxu0
        %536 = vmatprep.mubr.f32.mxu0 0.0
        %537 = vmatmul.mubr.f32.gmra.mrb[0].mxu0 %v379
        %v538 = vpop.f32.mrb[0].mxu0
        %v539 = vadd.f32 %v278, %v538
        %v540 = vpop.f32.mrb[0].mxu0
        %541 = vmatprep.mubr.f32.mxu0 0.0
        %542 = vmatmul.mubr.f32.gmra.mrb[0].mxu0 %v382
        %v543 = vpop.f32.mrb[0].mxu0
        %v544 = vadd.f32 %v283, %v543
        %v545 = vpop.f32.mrb[0].mxu0
        %546 = vmatprep.mubr.f32.mxu0 0.0
        %547 = vmatmul.mubr.f32.gmra.mrb[0].mxu0 %v385
        %v548 = vpop.f32.mrb[0].mxu0
        %v549 = vadd.f32 %v288, %v548
        %v550 = vpop.f32.mrb[0].mxu0
        %551 = vmatprep.mubr.f32.mxu0 0.0
        %552 = vmatmul.mubr.f32.gmra.mrb[0].mxu0 %v388
        %v553 = vpop.f32.mrb[0].mxu0
        %v554 = vadd.f32 %v293, %v553
        %v555 = vpop.f32.mrb[0].mxu0
        %556 = vmatprep.mubr.f32.mxu0 0.0
        %557 = vmatmul.mubr.f32.gmra.mrb[0].mxu0 %v391
        %v558 = vpop.f32.mrb[0].mxu0
        %v559 = vadd.f32 %v298, %v558
        %v560 = vpop.f32.mrb[0].mxu0
        %561 = vmatprep.mubr.f32.mxu0 0.0
        %562 = vmatmul.mubr.f32.gmra.mrb[0].mxu0 %v394
        %v563 = vpop.f32.mrb[0].mxu0
        %v564 = vadd.f32 %v303, %v563
        %v565 = vpop.f32.mrb[0].mxu0
        %566 = vmatprep.mubr.f32.mxu0 0.0
        %567 = vmatmul.mubr.f32.gmra.mrb[0].mxu0 %v397
        %v568 = vpop.f32.mrb[0].mxu0
        %v569 = vadd.f32 %v308, %v568
        %v570 = vpop.f32.mrb[0].mxu0
        %571 = vmatprep.mubr.f32.mxu0 0.0
        %572 = vmatmul.mubr.f32.gmra.mrb[0].mxu0 %v400
        %v573 = vpop.f32.mrb[0].mxu0
        %v574 = vadd.f32 %v313, %v573
        %v575 = vpop.f32.mrb[0].mxu0
        %576 = vmatprep.mubr.f32.mxu0 0.0
        %577 = vmatmul.mubr.f32.gmra.mrb[0].mxu0 %v403
        %v578 = vpop.f32.mrb[0].mxu0
        %v579 = vadd.f32 %v318, %v578
        %v580 = vpop.f32.mrb[0].mxu0
        %581 = vmatprep.mubr.f32.mxu0 0.0
        %582 = vmatmul.mubr.f32.gmra.mrb[0].mxu0 %v406
        %v583 = vpop.f32.mrb[0].mxu0
        %v584 = vadd.f32 %v323, %v583
        %v585 = vpop.f32.mrb[0].mxu0
        %586 = vmatprep.mubr.f32.mxu0 0.0
        %587 = vmatmul.mubr.f32.gmra.mrb[0].mxu0 %v409
        %v588 = vpop.f32.mrb[0].mxu0
        %v589 = vadd.f32 %v328, %v588
        %v590 = vpop.f32.mrb[0].mxu0
        %591 = vmatprep.mubr.f32.mxu0 0.0
        %592 = vmatmul.mubr.f32.gmra.mrb[0].mxu0 %v412
        %v593 = vpop.f32.mrb[0].mxu0
        %v594 = vadd.f32 %v333, %v593
        %v595 = vpop.f32.mrb[0].mxu0
        %596 = vmatprep.mubr.f32.mxu0 0.0
        %597 = vmatmul.mubr.f32.gmra.mrb[0].mxu0 %v415
        %v598 = vpop.f32.mrb[0].mxu0
        %v599 = vadd.f32 %v338, %v598
        %v600 = vpop.f32.mrb[0].mxu0
        %601 = vmatprep.mubr.f32.mxu0 0.0
        %602 = vmatmul.mubr.f32.gmra.mrb[0].mxu0 %v418
        %v603 = vpop.f32.mrb[0].mxu0
        %v604 = vadd.f32 %v343, %v603
        %v605 = vpop.f32.mrb[0].mxu0
        %606 = vmatprep.mubr.f32.mxu0 0.0
        %607 = vmatmul.mubr.f32.gmra.mrb[0].mxu0 %v421
        %v608 = vpop.f32.mrb[0].mxu0
        %v609 = vadd.f32 %v348, %v608
        %v610 = vpop.f32.mrb[0].mxu0
        %611 = vdwg.mxu0
        %vm612 = vcmp.gt.f32.partialorder %v494, 0.0
        %vm613 = vcmp.gt.f32.partialorder %v499, 0.0
        %vm614 = vcmp.gt.f32.partialorder %v504, 0.0
        %vm615 = vcmp.gt.f32.partialorder %v509, 0.0
        %vm616 = vcmp.gt.f32.partialorder %v514, 0.0
        %vm617 = vcmp.gt.f32.partialorder %v519, 0.0
        %vm618 = vcmp.gt.f32.partialorder %v524, 0.0
        %vm619 = vcmp.gt.f32.partialorder %v529, 0.0
        %vm620 = vcmp.gt.f32.partialorder %v534, 0.0
        %vm621 = vcmp.gt.f32.partialorder %v539, 0.0
        %vm622 = vcmp.gt.f32.partialorder %v544, 0.0
        %vm623 = vcmp.gt.f32.partialorder %v549, 0.0
        %vm624 = vcmp.gt.f32.partialorder %v554, 0.0
        %vm625 = vcmp.gt.f32.partialorder %v559, 0.0
        %vm626 = vcmp.gt.f32.partialorder %v564, 0.0
        %vm627 = vcmp.gt.f32.partialorder %v569, 0.0
        %vm628 = vcmp.gt.f32.partialorder %v574, 0.0
        %vm629 = vcmp.gt.f32.partialorder %v579, 0.0
        %vm630 = vcmp.gt.f32.partialorder %v584, 0.0
        %vm631 = vcmp.gt.f32.partialorder %v589, 0.0
        %vm632 = vcmp.gt.f32.partialorder %v594, 0.0
        %vm633 = vcmp.gt.f32.partialorder %v599, 0.0
        %vm634 = vcmp.gt.f32.partialorder %v604, 0.0
        %vm635 = vcmp.gt.f32.partialorder %v609, 0.0
        %v636 = vmul.f32 %v494, 0.2
        %v637 = vmul.f32 %v499, 0.2
        %v638 = vmul.f32 %v504, 0.2
        %v639 = vmul.f32 %v509, 0.2
        %v640 = vmul.f32 %v514, 0.2
        %v641 = vmul.f32 %v519, 0.2
        %v642 = vmul.f32 %v524, 0.2
        %v643 = vmul.f32 %v529, 0.2
        %v644 = vmul.f32 %v534, 0.2
        %v645 = vmul.f32 %v539, 0.2
        %v646 = vmul.f32 %v544, 0.2
        %v647 = vmul.f32 %v549, 0.2
        %v648 = vmul.f32 %v554, 0.2
        %v649 = vmul.f32 %v559, 0.2
        %v650 = vmul.f32 %v564, 0.2
        %v651 = vmul.f32 %v569, 0.2
        %v652 = vmul.f32 %v574, 0.2
        %v653 = vmul.f32 %v579, 0.2
        %v654 = vmul.f32 %v584, 0.2
        %v655 = vmul.f32 %v589, 0.2
        %v656 = vmul.f32 %v594, 0.2
        %v657 = vmul.f32 %v599, 0.2
        %v658 = vmul.f32 %v604, 0.2
        %v659 = vmul.f32 %v609, 0.2
        %v660 = vsel %vm612, %v494, %v636
        %v661 = vsel %vm613, %v499, %v637
        %v662 = vsel %vm614, %v504, %v638
        %v663 = vsel %vm615, %v509, %v639
        %v664 = vsel %vm616, %v514, %v640
        %v665 = vsel %vm617, %v519, %v641
        %v666 = vsel %vm618, %v524, %v642
        %v667 = vsel %vm619, %v529, %v643
        %v668 = vsel %vm620, %v534, %v644
        %v669 = vsel %vm621, %v539, %v645
        %v670 = vsel %vm622, %v544, %v646
        %v671 = vsel %vm623, %v549, %v647
        %v672 = vsel %vm624, %v554, %v648
        %v673 = vsel %vm625, %v559, %v649
        %v674 = vsel %vm626, %v564, %v650
        %v675 = vsel %vm627, %v569, %v651
        %v676 = vsel %vm628, %v574, %v652
        %v677 = vsel %vm629, %v579, %v653
        %v678 = vsel %vm630, %v584, %v654
        %v679 = vsel %vm631, %v589, %v655
        %v680 = vsel %vm632, %v594, %v656
        %v681 = vsel %vm633, %v599, %v657
        %v682 = vsel %vm634, %v604, %v658
        %v683 = vsel %vm635, %v609, %v659
        %v684 = vld [vmem:[%s0] sm:$0xff]
        %v685 = vld [vmem:[%s0 + $0x8] sm:$0xff]
        %v686 = vld [vmem:[%s0 + $0x10] sm:$0xff]
        %v687 = vld [vmem:[%s0 + $0x18] sm:$0xff]
        %v688 = vld [vmem:[%s0 + $0x20] sm:$0xff]
        %v689 = vld [vmem:[%s0 + $0x28] sm:$0xff]
        %v690 = vld [vmem:[%s0 + $0x30] sm:$0xff]
        %v691 = vld [vmem:[%s0 + $0x38] sm:$0xff]
        %v692 = vld [vmem:[%s0 + $0x40] sm:$0xff]
        %v693 = vld [vmem:[%s0 + $0x48] sm:$0xff]
        %v694 = vld [vmem:[%s0 + $0x50] sm:$0xff]
        %v695 = vld [vmem:[%s0 + $0x58] sm:$0xff]
        %v696 = vld [vmem:[%s0 + $0x60] sm:$0xff]
        %v697 = vld [vmem:[%s0 + $0x68] sm:$0xff]
        %v698 = vld [vmem:[%s0 + $0x70] sm:$0xff]
        %v699 = vld [vmem:[%s0 + $0x78] sm:$0xff]
        %v700 = vld [vmem:[%s0 + $0x80] sm:$0xff]
        %v701 = vld [vmem:[%s0 + $0x88] sm:$0xff]
        %v702 = vld [vmem:[%s0 + $0x90] sm:$0xff]
        %v703 = vld [vmem:[%s0 + $0x98] sm:$0xff]
        %v704 = vld [vmem:[%s0 + $0xa0] sm:$0xff]
        %v705 = vld [vmem:[%s0 + $0xa8] sm:$0xff]
        %v706 = vld [vmem:[%s0 + $0xb0] sm:$0xff]
        %v707 = vld [vmem:[%s0 + $0xb8] sm:$0xff]
        %v708 = vld [vmem:[%s0 + $0xc0] sm:$0xff]
        %v709 = vld [vmem:[%s0 + $0xc8] sm:$0xff]
        %v710 = vld [vmem:[%s0 + $0xd0] sm:$0xff]
        %v711 = vld [vmem:[%s0 + $0xd8] sm:$0xff]
        %v712 = vld [vmem:[%s0 + $0xe0] sm:$0xff]
        %v713 = vld [vmem:[%s0 + $0xe8] sm:$0xff]
        %v714 = vld [vmem:[%s0 + $0xf0] sm:$0xff]
        %v715 = vld [vmem:[%s0 + $0xf8] sm:$0xff]
        %v716 = vld [vmem:[%s0 + $0x100] sm:$0xff]
        %v717 = vld [vmem:[%s0 + $0x108] sm:$0xff]
        %v718 = vld [vmem:[%s0 + $0x110] sm:$0xff]
        %v719 = vld [vmem:[%s0 + $0x118] sm:$0xff]
        %v720 = vld [vmem:[%s0 + $0x120] sm:$0xff]
        %v721 = vld [vmem:[%s0 + $0x128] sm:$0xff]
        %v722 = vld [vmem:[%s0 + $0x130] sm:$0xff]
        %v723 = vld [vmem:[%s0 + $0x138] sm:$0xff]
        %v724 = vld [vmem:[%s0 + $0x140] sm:$0xff]
        %v725 = vld [vmem:[%s0 + $0x148] sm:$0xff]
        %v726 = vld [vmem:[%s0 + $0x150] sm:$0xff]
        %v727 = vld [vmem:[%s0 + $0x158] sm:$0xff]
        %v728 = vld [vmem:[%s0 + $0x160] sm:$0xff]
        %v729 = vld [vmem:[%s0 + $0x168] sm:$0xff]
        %v730 = vld [vmem:[%s0 + $0x170] sm:$0xff]
        %v731 = vld [vmem:[%s0 + $0x178] sm:$0xff]
        %732 = vset.pattern.permute.xlu0 1
        %733 = vperm.xlu0 %732, %v204
        %v734 = vpop.permute.xlu0 %733
        %736 = vset.pattern.permute.xlu0 1
        %737 = vperm.xlu0 %736, %v205
        %v738 = vpop.permute.xlu0 %737
        %740 = vset.pattern.permute.xlu0 1
        %741 = vperm.xlu0 %740, %v206
        %v742 = vpop.permute.xlu0 %741
        %744 = vset.pattern.permute.xlu0 1
        %745 = vperm.xlu0 %744, %v207
        %v746 = vpop.permute.xlu0 %745
        %748 = vset.pattern.permute.xlu0 1
        %749 = vperm.xlu0 %748, %v208
        %v750 = vpop.permute.xlu0 %749
        %752 = vset.pattern.permute.xlu0 1
        %753 = vperm.xlu0 %752, %v209
        %v754 = vpop.permute.xlu0 %753
        %756 = vset.pattern.permute.xlu0 1
        %757 = vperm.xlu0 %756, %v210
        %v758 = vpop.permute.xlu0 %757
        %760 = vset.pattern.permute.xlu0 1
        %761 = vperm.xlu0 %760, %v211
        %v762 = vpop.permute.xlu0 %761
        %764 = vset.pattern.permute.xlu0 1
        %765 = vperm.xlu0 %764, %v212
        %v766 = vpop.permute.xlu0 %765
        %768 = vset.pattern.permute.xlu0 1
        %769 = vperm.xlu0 %768, %v213
        %v770 = vpop.permute.xlu0 %769
        %772 = vset.pattern.permute.xlu0 1
        %773 = vperm.xlu0 %772, %v214
        %v774 = vpop.permute.xlu0 %773
        %776 = vset.pattern.permute.xlu0 1
        %777 = vperm.xlu0 %776, %v215
        %v778 = vpop.permute.xlu0 %777
        %780 = vset.pattern.permute.xlu0 1
        %781 = vperm.xlu0 %780, %v216
        %v782 = vpop.permute.xlu0 %781
        %784 = vset.pattern.permute.xlu0 1
        %785 = vperm.xlu0 %784, %v217
        %v786 = vpop.permute.xlu0 %785
        %788 = vset.pattern.permute.xlu0 1
        %789 = vperm.xlu0 %788, %v218
        %v790 = vpop.permute.xlu0 %789
        %792 = vset.pattern.permute.xlu0 1
        %793 = vperm.xlu0 %792, %v219
        %v794 = vpop.permute.xlu0 %793
        %796 = vset.pattern.permute.xlu0 1
        %797 = vperm.xlu0 %796, %v220
        %v798 = vpop.permute.xlu0 %797
        %800 = vset.pattern.permute.xlu0 1
        %801 = vperm.xlu0 %800, %v221
        %v802 = vpop.permute.xlu0 %801
        %804 = vset.pattern.permute.xlu0 1
        %805 = vperm.xlu0 %804, %v222
        %v806 = vpop.permute.xlu0 %805
        %808 = vset.pattern.permute.xlu0 1
        %809 = vperm.xlu0 %808, %v223
        %v810 = vpop.permute.xlu0 %809
        %812 = vset.pattern.permute.xlu0 1
        %813 = vperm.xlu0 %812, %v224
        %v814 = vpop.permute.xlu0 %813
        %816 = vset.pattern.permute.xlu0 1
        %817 = vperm.xlu0 %816, %v225
        %v818 = vpop.permute.xlu0 %817
        %820 = vset.pattern.permute.xlu0 1
        %821 = vperm.xlu0 %820, %v226
        %v822 = vpop.permute.xlu0 %821
        %824 = vset.pattern.permute.xlu0 1
        %825 = vperm.xlu0 %824, %v227
        %v826 = vpop.permute.xlu0 %825
        %vm828 = vcmask 523264
        %v830 = vsel %vm828, %v685, 0
        %v833 = vsel %vm828, %v687, 0
        %v836 = vsel %vm828, %v689, 0
        %v839 = vsel %vm828, %v691, 0
        %v842 = vsel %vm828, %v693, 0
        %v845 = vsel %vm828, %v695, 0
        %v848 = vsel %vm828, %v697, 0
        %v851 = vsel %vm828, %v699, 0
        %v854 = vsel %vm828, %v701, 0
        %v857 = vsel %vm828, %v703, 0
        %v860 = vsel %vm828, %v705, 0
        %v863 = vsel %vm828, %v707, 0
        %v866 = vsel %vm828, %v709, 0
        %v869 = vsel %vm828, %v711, 0
        %v872 = vsel %vm828, %v713, 0
        %v875 = vsel %vm828, %v715, 0
        %v878 = vsel %vm828, %v717, 0
        %v881 = vsel %vm828, %v719, 0
        %v884 = vsel %vm828, %v721, 0
        %v887 = vsel %vm828, %v723, 0
        %v890 = vsel %vm828, %v725, 0
        %v893 = vsel %vm828, %v727, 0
        %v896 = vsel %vm828, %v729, 0
        %v899 = vsel %vm828, %v731, 0
        %901 = vmatprep.subr.mxu0 0.0
        %902 = vmatpush1.msra.mxu0 %v660
        %903 = vmatprep.subr.mxu0 0.0
        %904 = vmatpush1.msra.mxu0 %v661
        %905 = vmatprep.subr.mxu0 0.0
        %906 = vmatpush1.msra.mxu0 %v662
        %907 = vmatprep.subr.mxu0 0.0
        %908 = vmatpush1.msra.mxu0 %v663
        %909 = vmatprep.subr.mxu0 0.0
        %910 = vmatpush1.msra.mxu0 %v664
        %911 = vmatprep.subr.mxu0 0.0
        %912 = vmatpush1.msra.mxu0 %v665
        %913 = vmatprep.subr.mxu0 0.0
        %914 = vmatpush1.msra.mxu0 %v666
        %915 = vmatprep.subr.mxu0 0.0
        %916 = vmatpush1.msra.mxu0 %v667
        %917 = vmatprep.subr.mxu0 0.0
        %918 = vmatpush1.msra.mxu0 %v668
        %919 = vmatprep.subr.mxu0 0.0
        %920 = vmatpush1.msra.mxu0 %v669
        %921 = vmatprep.subr.mxu0 0.0
        %922 = vmatpush1.msra.mxu0 %v670
        %923 = vmatprep.subr.mxu0 0.0
        %924 = vmatpush1.msra.mxu0 %v671
        %925 = vmatprep.subr.mxu0 0.0
        %926 = vmatpush1.msra.mxu0 %v672
        %927 = vmatprep.subr.mxu0 0.0
        %928 = vmatpush1.msra.mxu0 %v673
        %929 = vmatprep.subr.mxu0 0.0
        %930 = vmatpush1.msra.mxu0 %v674
        %931 = vmatprep.subr.mxu0 0.0
        %932 = vmatpush1.msra.mxu0 %v675
        %933 = vmatprep.subr.mxu0 0.0
        %934 = vmatpush1.msra.mxu0 %v676
        %935 = vmatprep.subr.mxu0 0.0
        %936 = vmatpush1.msra.mxu0 %v677
        %937 = vmatprep.subr.mxu0 0.0
        %938 = vmatpush1.msra.mxu0 %v678
        %939 = vmatprep.subr.mxu0 0.0
        %940 = vmatpush1.msra.mxu0 %v679
        %941 = vmatprep.subr.mxu0 0.0
        %942 = vmatpush1.msra.mxu0 %v680
        %943 = vmatprep.subr.mxu0 0.0
        %944 = vmatpush1.msra.mxu0 %v681
        %945 = vmatprep.subr.mxu0 0.0
        %946 = vmatpush1.msra.mxu0 %v682
        %947 = vmatprep.subr.mxu0 0.0
        %948 = vmatpush1.msra.mxu0 %v683
        %949 = vmatprep.subr.mxu0 0.0
        %950 = vmatpush1.msra.mxu0 0.0
        %951 = vmatprep.subr.mxu0 0.0
        %952 = vmatpush1.msra.mxu0 0.0
        %953 = vmatprep.subr.mxu0 0.0
        %954 = vmatpush1.msra.mxu0 0.0
        %955 = vmatprep.subr.mxu0 0.0
        %956 = vmatpush1.msra.mxu0 0.0
        %957 = vmatprep.subr.mxu0 0.0
        %958 = vmatpush1.msra.mxu0 0.0
        %959 = vmatprep.subr.mxu0 0.0
        %960 = vmatpush1.msra.mxu0 0.0
        %961 = vmatprep.subr.mxu0 0.0
        %962 = vmatpush1.msra.mxu0 0.0
        %963 = vmatprep.subr.mxu0 0.0
        %964 = vmatpush1.msra.mxu0 0.0
        %965 = vmatprep.mubr.f32.mxu0 %v830
        %966 = vmatmul.mubr.f32.gmra.mrb[0].mxu0 %v684
        %v967 = vpop.f32.mrb[0].mxu0
        %v968 = vadd.f32 %v734, %v967
        %v969 = vpop.f32.mrb[0].mxu0
        %970 = vmatprep.mubr.f32.mxu0 %v833
        %971 = vmatmul.mubr.f32.gmra.mrb[0].mxu0 %v686
        %v972 = vpop.f32.mrb[0].mxu0
        %v973 = vadd.f32 %v738, %v972
        %v974 = vpop.f32.mrb[0].mxu0
        %975 = vmatprep.mubr.f32.mxu0 %v836
        %976 = vmatmul.mubr.f32.gmra.mrb[0].mxu0 %v688
        %v977 = vpop.f32.mrb[0].mxu0
        %v978 = vadd.f32 %v742, %v977
        %v979 = vpop.f32.mrb[0].mxu0
        %980 = vmatprep.mubr.f32.mxu0 %v839
        %981 = vmatmul.mubr.f32.gmra.mrb[0].mxu0 %v690
        %v982 = vpop.f32.mrb[0].mxu0
        %v983 = vadd.f32 %v746, %v982
        %v984 = vpop.f32.mrb[0].mxu0
        %985 = vmatprep.mubr.f32.mxu0 %v842
        %986 = vmatmul.mubr.f32.gmra.mrb[0].mxu0 %v692
        %v987 = vpop.f32.mrb[0].mxu0
        %v988 = vadd.f32 %v750, %v987
        %v989 = vpop.f32.mrb[0].mxu0
        %990 = vmatprep.mubr.f32.mxu0 %v845
        %991 = vmatmul.mubr.f32.gmra.mrb[0].mxu0 %v694
        %v992 = vpop.f32.mrb[0].mxu0
        %v993 = vadd.f32 %v754, %v992
        %v994 = vpop.f32.mrb[0].mxu0
        %995 = vmatprep.mubr.f32.mxu0 %v848
        %996 = vmatmul.mubr.f32.gmra.mrb[0].mxu0 %v696
        %v997 = vpop.f32.mrb[0].mxu0
        %v998 = vadd.f32 %v758, %v997
        %v999 = vpop.f32.mrb[0].mxu0
        %1000 = vmatprep.mubr.f32.mxu0 %v851
        %1001 = vmatmul.mubr.f32.gmra.mrb[0].mxu0 %v698
        %v1002 = vpop.f32.mrb[0].mxu0
        %v1003 = vadd.f32 %v762, %v1002
        %v1004 = vpop.f32.mrb[0].mxu0
        %1005 = vmatprep.mubr.f32.mxu0 %v854
        %1006 = vmatmul.mubr.f32.gmra.mrb[0].mxu0 %v700
        %v1007 = vpop.f32.mrb[0].mxu0
        %v1008 = vadd.f32 %v766, %v1007
        %v1009 = vpop.f32.mrb[0].mxu0
        %1010 = vmatprep.mubr.f32.mxu0 %v857
        %1011 = vmatmul.mubr.f32.gmra.mrb[0].mxu0 %v702
        %v1012 = vpop.f32.mrb[0].mxu0
        %v1013 = vadd.f32 %v770, %v1012
        %v1014 = vpop.f32.mrb[0].mxu0
        %1015 = vmatprep.mubr.f32.mxu0 %v860
        %1016 = vmatmul.mubr.f32.gmra.mrb[0].mxu0 %v704
        %v1017 = vpop.f32.mrb[0].mxu0
        %v1018 = vadd.f32 %v774, %v1017
        %v1019 = vpop.f32.mrb[0].mxu0
        %1020 = vmatprep.mubr.f32.mxu0 %v863
        %1021 = vmatmul.mubr.f32.gmra.mrb[0].mxu0 %v706
        %v1022 = vpop.f32.mrb[0].mxu0
        %v1023 = vadd.f32 %v778, %v1022
        %v1024 = vpop.f32.mrb[0].mxu0
        %1025 = vmatprep.mubr.f32.mxu0 %v866
        %1026 = vmatmul.mubr.f32.gmra.mrb[0].mxu0 %v708
        %v1027 = vpop.f32.mrb[0].mxu0
        %v1028 = vadd.f32 %v782, %v1027
        %v1029 = vpop.f32.mrb[0].mxu0
        %1030 = vmatprep.mubr.f32.mxu0 %v869
        %1031 = vmatmul.mubr.f32.gmra.mrb[0].mxu0 %v710
        %v1032 = vpop.f32.mrb[0].mxu0
        %v1033 = vadd.f32 %v786, %v1032
        %v1034 = vpop.f32.mrb[0].mxu0
        %1035 = vmatprep.mubr.f32.mxu0 %v872
        %1036 = vmatmul.mubr.f32.gmra.mrb[0].mxu0 %v712
        %v1037 = vpop.f32.mrb[0].mxu0
        %v1038 = vadd.f32 %v790, %v1037
        %v1039 = vpop.f32.mrb[0].mxu0
        %1040 = vmatprep.mubr.f32.mxu0 %v875
        %1041 = vmatmul.mubr.f32.gmra.mrb[0].mxu0 %v714
        %v1042 = vpop.f32.mrb[0].mxu0
        %v1043 = vadd.f32 %v794, %v1042
        %v1044 = vpop.f32.mrb[0].mxu0
        %1045 = vmatprep.mubr.f32.mxu0 %v878
        %1046 = vmatmul.mubr.f32.gmra.mrb[0].mxu0 %v716
        %v1047 = vpop.f32.mrb[0].mxu0
        %v1048 = vadd.f32 %v798, %v1047
        %v1049 = vpop.f32.mrb[0].mxu0
        %1050 = vmatprep.mubr.f32.mxu0 %v881
        %1051 = vmatmul.mubr.f32.gmra.mrb[0].mxu0 %v718
        %v1052 = vpop.f32.mrb[0].mxu0
        %v1053 = vadd.f32 %v802, %v1052
        %v1054 = vpop.f32.mrb[0].mxu0
        %1055 = vmatprep.mubr.f32.mxu0 %v884
        %1056 = vmatmul.mubr.f32.gmra.mrb[0].mxu0 %v720
        %v1057 = vpop.f32.mrb[0].mxu0
        %v1058 = vadd.f32 %v806, %v1057
        %v1059 = vpop.f32.mrb[0].mxu0
        %1060 = vmatprep.mubr.f32.mxu0 %v887
        %1061 = vmatmul.mubr.f32.gmra.mrb[0].mxu0 %v722
        %v1062 = vpop.f32.mrb[0].mxu0
        %v1063 = vadd.f32 %v810, %v1062
        %v1064 = vpop.f32.mrb[0].mxu0
        %1065 = vmatprep.mubr.f32.mxu0 %v890
        %1066 = vmatmul.mubr.f32.gmra.mrb[0].mxu0 %v724
        %v1067 = vpop.f32.mrb[0].mxu0
        %v1068 = vadd.f32 %v814, %v1067
        %v1069 = vpop.f32.mrb[0].mxu0
        %1070 = vmatprep.mubr.f32.mxu0 %v893
        %1071 = vmatmul.mubr.f32.gmra.mrb[0].mxu0 %v726
        %v1072 = vpop.f32.mrb[0].mxu0
        %v1073 = vadd.f32 %v818, %v1072
        %v1074 = vpop.f32.mrb[0].mxu0
        %1075 = vmatprep.mubr.f32.mxu0 %v896
        %1076 = vmatmul.mubr.f32.gmra.mrb[0].mxu0 %v728
        %v1077 = vpop.f32.mrb[0].mxu0
        %v1078 = vadd.f32 %v822, %v1077
        %v1079 = vpop.f32.mrb[0].mxu0
        %1080 = vmatprep.mubr.f32.mxu0 %v899
        %1081 = vmatmul.mubr.f32.gmra.mrb[0].mxu0 %v730
        %v1082 = vpop.f32.mrb[0].mxu0
        %v1083 = vadd.f32 %v826, %v1082
        %v1084 = vpop.f32.mrb[0].mxu0
        %1085 = vdwg.mxu0
        %vm1086 = vcmp.gt.f32.partialorder %v968, 0.0
        %vm1087 = vcmp.gt.f32.partialorder %v973, 0.0
        %vm1088 = vcmp.gt.f32.partialorder %v978, 0.0
        %vm1089 = vcmp.gt.f32.partialorder %v983, 0.0
        %vm1090 = vcmp.gt.f32.partialorder %v988, 0.0
        %vm1091 = vcmp.gt.f32.partialorder %v993, 0.0
        %vm1092 = vcmp.gt.f32.partialorder %v998, 0.0
        %vm1093 = vcmp.gt.f32.partialorder %v1003, 0.0
        %vm1094 = vcmp.gt.f32.partialorder %v1008, 0.0
        %vm1095 = vcmp.gt.f32.partialorder %v1013, 0.0
        %vm1096 = vcmp.gt.f32.partialorder %v1018, 0.0
        %vm1097 = vcmp.gt.f32.partialorder %v1023, 0.0
        %vm1098 = vcmp.gt.f32.partialorder %v1028, 0.0
        %vm1099 = vcmp.gt.f32.partialorder %v1033, 0.0
        %vm1100 = vcmp.gt.f32.partialorder %v1038, 0.0
        %vm1101 = vcmp.gt.f32.partialorder %v1043, 0.0
        %vm1102 = vcmp.gt.f32.partialorder %v1048, 0.0
        %vm1103 = vcmp.gt.f32.partialorder %v1053, 0.0
        %vm1104 = vcmp.gt.f32.partialorder %v1058, 0.0
        %vm1105 = vcmp.gt.f32.partialorder %v1063, 0.0
        %vm1106 = vcmp.gt.f32.partialorder %v1068, 0.0
        %vm1107 = vcmp.gt.f32.partialorder %v1073, 0.0
        %vm1108 = vcmp.gt.f32.partialorder %v1078, 0.0
        %vm1109 = vcmp.gt.f32.partialorder %v1083, 0.0
        %v1110 = vmul.f32 %v968, 0.2
        %v1111 = vmul.f32 %v973, 0.2
        %v1112 = vmul.f32 %v978, 0.2
        %v1113 = vmul.f32 %v983, 0.2
        %v1114 = vmul.f32 %v988, 0.2
        %v1115 = vmul.f32 %v993, 0.2
        %v1116 = vmul.f32 %v998, 0.2
        %v1117 = vmul.f32 %v1003, 0.2
        %v1118 = vmul.f32 %v1008, 0.2
        %v1119 = vmul.f32 %v1013, 0.2
        %v1120 = vmul.f32 %v1018, 0.2
        %v1121 = vmul.f32 %v1023, 0.2
        %v1122 = vmul.f32 %v1028, 0.2
        %v1123 = vmul.f32 %v1033, 0.2
        %v1124 = vmul.f32 %v1038, 0.2
        %v1125 = vmul.f32 %v1043, 0.2
        %v1126 = vmul.f32 %v1048, 0.2
        %v1127 = vmul.f32 %v1053, 0.2
        %v1128 = vmul.f32 %v1058, 0.2
        %v1129 = vmul.f32 %v1063, 0.2
        %v1130 = vmul.f32 %v1068, 0.2
        %v1131 = vmul.f32 %v1073, 0.2
        %v1132 = vmul.f32 %v1078, 0.2
        %v1133 = vmul.f32 %v1083, 0.2
        %v1134 = vsel %vm1086, %v968, %v1110
        %v1135 = vsel %vm1087, %v973, %v1111
        %v1136 = vsel %vm1088, %v978, %v1112
        %v1137 = vsel %vm1089, %v983, %v1113
        %v1138 = vsel %vm1090, %v988, %v1114
        %v1139 = vsel %vm1091, %v993, %v1115
        %v1140 = vsel %vm1092, %v998, %v1116
        %v1141 = vsel %vm1093, %v1003, %v1117
        %v1142 = vsel %vm1094, %v1008, %v1118
        %v1143 = vsel %vm1095, %v1013, %v1119
        %v1144 = vsel %vm1096, %v1018, %v1120
        %v1145 = vsel %vm1097, %v1023, %v1121
        %v1146 = vsel %vm1098, %v1028, %v1122
        %v1147 = vsel %vm1099, %v1033, %v1123
        %v1148 = vsel %vm1100, %v1038, %v1124
        %v1149 = vsel %vm1101, %v1043, %v1125
        %v1150 = vsel %vm1102, %v1048, %v1126
        %v1151 = vsel %vm1103, %v1053, %v1127
        %v1152 = vsel %vm1104, %v1058, %v1128
        %v1153 = vsel %vm1105, %v1063, %v1129
        %v1154 = vsel %vm1106, %v1068, %v1130
        %v1155 = vsel %vm1107, %v1073, %v1131
        %v1156 = vsel %vm1108, %v1078, %v1132
        %v1157 = vsel %vm1109, %v1083, %v1133
        %v1158 = vld [vmem:[%s0 + $0x300] sm:$0xff]
        %v1159 = vld [vmem:[%s0 + $0x308] sm:$0xff]
        %v1160 = vld [vmem:[%s0 + $0x310] sm:$0xff]
        %1162 = vset.pattern.permute.xlu0 2
        %1163 = vperm.xlu0 %1162, %v1160
        %v1164 = vpop.permute.xlu0 %1163
        %v1167 = vsel %vm828, %v1159, 0
        %1169 = vmatprep.subr.mxu0 0.0
        %1170 = vmatpush1.msra.mxu0 %v1134
        %1171 = vmatprep.subr.mxu0 0.0
        %1172 = vmatpush1.msra.mxu0 %v1135
        %1173 = vmatprep.subr.mxu0 0.0
        %1174 = vmatpush1.msra.mxu0 %v1136
        %1175 = vmatprep.subr.mxu0 0.0
        %1176 = vmatpush1.msra.mxu0 %v1137
        %1177 = vmatprep.subr.mxu0 0.0
        %1178 = vmatpush1.msra.mxu0 %v1138
        %1179 = vmatprep.subr.mxu0 0.0
        %1180 = vmatpush1.msra.mxu0 %v1139
        %1181 = vmatprep.subr.mxu0 0.0
        %1182 = vmatpush1.msra.mxu0 %v1140
        %1183 = vmatprep.subr.mxu0 0.0
        %1184 = vmatpush1.msra.mxu0 %v1141
        %1185 = vmatprep.subr.mxu0 0.0
        %1186 = vmatpush1.msra.mxu0 %v1142
        %1187 = vmatprep.subr.mxu0 0.0
        %1188 = vmatpush1.msra.mxu0 %v1143
        %1189 = vmatprep.subr.mxu0 0.0
        %1190 = vmatpush1.msra.mxu0 %v1144
        %1191 = vmatprep.subr.mxu0 0.0
        %1192 = vmatpush1.msra.mxu0 %v1145
        %1193 = vmatprep.subr.mxu0 0.0
        %1194 = vmatpush1.msra.mxu0 %v1146
        %1195 = vmatprep.subr.mxu0 0.0
        %1196 = vmatpush1.msra.mxu0 %v1147
        %1197 = vmatprep.subr.mxu0 0.0
        %1198 = vmatpush1.msra.mxu0 %v1148
        %1199 = vmatprep.subr.mxu0 0.0
        %1200 = vmatpush1.msra.mxu0 %v1149
        %1201 = vmatprep.subr.mxu0 0.0
        %1202 = vmatpush1.msra.mxu0 %v1150
        %1203 = vmatprep.subr.mxu0 0.0
        %1204 = vmatpush1.msra.mxu0 %v1151
        %1205 = vmatprep.subr.mxu0 0.0
        %1206 = vmatpush1.msra.mxu0 %v1152
        %1207 = vmatprep.subr.mxu0 0.0
        %1208 = vmatpush1.msra.mxu0 %v1153
        %1209 = vmatprep.subr.mxu0 0.0
        %1210 = vmatpush1.msra.mxu0 %v1154
        %1211 = vmatprep.subr.mxu0 0.0
        %1212 = vmatpush1.msra.mxu0 %v1155
        %1213 = vmatprep.subr.mxu0 0.0
        %1214 = vmatpush1.msra.mxu0 %v1156
        %1215 = vmatprep.subr.mxu0 0.0
        %1216 = vmatpush1.msra.mxu0 %v1157
        %1217 = vmatprep.subr.mxu0 0.0
        %1218 = vmatpush1.msra.mxu0 0.0
        %1219 = vmatprep.subr.mxu0 0.0
        %1220 = vmatpush1.msra.mxu0 0.0
        %1221 = vmatprep.subr.mxu0 0.0
        %1222 = vmatpush1.msra.mxu0 0.0
        %1223 = vmatprep.subr.mxu0 0.0
        %1224 = vmatpush1.msra.mxu0 0.0
        %1225 = vmatprep.subr.mxu0 0.0
        %1226 = vmatpush1.msra.mxu0 0.0
        %1227 = vmatprep.subr.mxu0 0.0
        %1228 = vmatpush1.msra.mxu0 0.0
        %1229 = vmatprep.subr.mxu0 0.0
        %1230 = vmatpush1.msra.mxu0 0.0
        %1231 = vmatprep.subr.mxu0 0.0
        %1232 = vmatpush1.msra.mxu0 0.0
        %1233 = vmatprep.mubr.f32.mxu0 %v1167
        %1234 = vmatmul.mubr.f32.gmra.mrb[0].mxu0 %v1158
        %v1235 = vpop.f32.mrb[0].mxu0
        %v1236 = vadd.f32 %v1164, %v1235
        %v1237 = vpop.f32.mrb[0].mxu0
        %1238 = vdwg.mxu0
        %1239 = vst [vmem:[%s179] sm:$0xff] %v1236
        %p1240 = scmp.lt.s32.totalorder %s13, 3
        %s1241 = scalar_select %p1240, %s13, 3
        %s1242 = smul.addr %s1241, 8
        %s1243 = scalar_lea.vmem %s2, %s1242
        // Predicated region
        $region67: #{generator_forward.1} parent=61 // pred_check
          %p1244 = pneg %p78
        $region68: #{generator_forward.1} parent=61 // pred_check_branch
          %1246 = sbr.rel (%p1244) target = $region70
        $region69: #{generator_forward.1} parent=61 // pred_region
          _
        $region70: #{generator_forward.1} parent=61 // pred_fallthru
          _
      $region62: #{generator_forward.1} parent=5 // pred_fallthru
        _
      %p1247 = scmp.le.s32.totalorder 2, %s8
      // Predicated region
      $region71: #{generator_forward.1} parent=5 // pred_check
        %p1248 = pneg %p1247
      $region72: #{generator_forward.1} parent=5 // pred_check_branch
        %1250 = sbr.rel (%p1248) target = $region74
      $region73: #{generator_forward.1} parent=5 // pred_region
        %s1251 = ssub.s32 %s8, 2
        // Predicated region
        $region75: #{generator_forward.1} parent=73 // pred_check
          %p1252 = pneg %p84
        $region76: #{generator_forward.1} parent=73 // pred_check_branch
          %1254 = sbr.rel (%p1252) target = $region78
        $region77: #{generator_forward.1} parent=73 // pred_region
          %p1255 = scmp.lt.s32.totalorder %s14, 3
          %s1256 = scalar_select %p1255, %s14, 3
          %s1257 = smul.addr %s1256, 8
          %s1258 = scalar_lea.vmem %s2, %s1257
        $region78: #{generator_forward.1} parent=73 // pred_fallthru
          _
      $region74: #{generator_forward.1} parent=5 // pred_fallthru
        _
    $region6: #{generator_forward.1} parent=1 // loop_footer
      %s12 = sadd.s32 1, %s8
    $region7: #{generator_forward.1} parent=1 // loop_footer_branch
      %7 = sbr.rel target = $region3
    $region8: #{generator_forward.1} parent=1 // loop_exit
      _

</llo_original>
